<compile_context>
chip_gen: v7x
topology: tpu7x:2x2x1
jax: 0.10.0
libtpu: 0.0.40
codegen_flags: <defaults>
</compile_context>

<pallas_src>
import functools

import jax
import jax.numpy as jnp
from jax.experimental import pallas as pl
from jax.experimental.pallas import tpu as pltpu


def _partial_entropy_kernel(pred_ref, dmap_ref, out_ref, *, hw, tile_hw, ragged):
    # pred_ref: (1, C, T) native dtype; dmap_ref: (1, 1, T); out_ref: (1, 1, 8, 128) f32
    x = pred_ref[0].astype(jnp.float32)                  # (C, T) upcast in VMEM
    m = jnp.max(x, axis=0, keepdims=True)                # (1, T) sublane reduce
    z = x - m                                            # (C, T)
    e = jnp.exp(z)                                       # (C, T) EUP
    s = jnp.sum(e, axis=0, keepdims=True)                # (1, T)
    ez = jnp.sum(e * z, axis=0, keepdims=True)           # (1, T)
    # sum_c softmax*log_softmax without materializing either (max-shifted):
    neg_ent = ez / s - jnp.log(s)                        # (1, T)
    d = dmap_ref[0].astype(jnp.float32)                  # (1, T) raw (no /255 here)
    ent = d * neg_ent                                    # per-pixel, unscaled

    if ragged:
        # Last spatial block may overhang HW: OOB input lanes are garbage, so
        # zero them before they can reach the partial sum / nonzero count.
        i = pl.program_id(1)
        lane = jax.lax.broadcasted_iota(jnp.int32, ent.shape, 1)
        ent = jnp.where(lane < (hw - i * tile_hw), ent, 0.0)

    psum = jnp.sum(ent, axis=-1, keepdims=True)                               # (1, 1)
    pcnt = jnp.sum((ent != 0.0).astype(jnp.float32), axis=-1, keepdims=True)  # (1, 1)

    # Pack the two per-block scalars into a sublane/lane-aligned (8,128) tile.
    row = jax.lax.broadcasted_iota(jnp.int32, (8, 128), 0)
    col = jax.lax.broadcasted_iota(jnp.int32, (8, 128), 1)
    blk = jnp.where((row == 0) & (col == 0), psum, 0.0)
    blk = jnp.where((row == 1) & (col == 0), pcnt, blk)
    out_ref[0, 0] = blk


def distance_map_min_entropy(pred, distancemap, epsilon=0.1, max_tile=16384):
    """pred: (B, C, H, W) float, distancemap: (B, H, W) -> scalar loss."""
    B, C, H, W = pred.shape
    HW = H * W

    # Free reshapes only (no transpose, no dtype cast): class axis -> sublanes,
    # spatial axis -> lanes.  Upcast to f32 happens inside the kernel.
    pred3 = pred.reshape(B, C, HW)
    dmap3 = distancemap.reshape(B, 1, HW)

    def round_up(x, m):
        return ((x + m - 1) // m) * m

    if HW <= max_tile:
        tile_hw = HW                      # block equals full spatial dim -> legal
    else:
        tile_hw = max_tile                # multiple of 128 -> lane-aligned
    num_tiles = pl.cdiv(HW, tile_hw)
    # v7x megacore: guarantee >= 2 parallel grid blocks when feasible.
    if B * num_tiles < 2 and HW >= 256:
        tile_hw = round_up(pl.cdiv(HW, 2), 128)
        num_tiles = pl.cdiv(HW, tile_hw)
    ragged = (num_tiles * tile_hw) != HW

    kernel = functools.partial(
        _partial_entropy_kernel, hw=HW, tile_hw=tile_hw, ragged=ragged)

    partials = pl.pallas_call(
        kernel,
        out_shape=jax.ShapeDtypeStruct((B, num_tiles, 8, 128), jnp.float32),
        grid=(B, num_tiles),
        in_specs=[
            pl.BlockSpec((1, C, tile_hw), lambda b, i: (b, 0, i)),
            pl.BlockSpec((1, 1, tile_hw), lambda b, i: (b, 0, i)),
        ],
        out_specs=pl.BlockSpec((1, 1, 8, 128), lambda b, i: (b, i, 0, 0)),
        compiler_params=pltpu.CompilerParams(
            dimension_semantics=("parallel", "parallel"),
            vmem_limit_bytes=64 * 1024 * 1024,
        ),
    )(pred3, dmap3)

    # Tiny glue reduction over per-block partials (B * num_tiles values each).
    total = jnp.sum(partials[:, :, 0, 0])
    count = jnp.sum(partials[:, :, 1, 0].astype(jnp.int32))  # exact integer count
    # distancemap/255 folded here; 0/0 -> NaN matches the reference module.
    return -total / (255.0 * count)


def _reference(pred, distancemap):
    # Pure-JAX reference mirroring the PyTorch module.
    x_logsoftmax = jax.nn.log_softmax(pred, axis=1)
    x_softmax = jax.nn.softmax(pred, axis=1)
    dm = (distancemap / 255.0)[:, None, :, :]
    distance_logits = dm * x_softmax * x_logsoftmax
    distance_entropy = jnp.sum(distance_logits, axis=1)
    count = jnp.count_nonzero(distance_entropy)
    return -jnp.sum(distance_entropy) / count


if __name__ == "__main__":
    key = jax.random.PRNGKey(0)
    k1, k2, k3, k4 = jax.random.split(key, 4)

    # Test 1: module-default numclass=21, single full-spatial block per batch.
    B, C, H, W = 2, 21, 16, 16
    pred = jax.random.normal(k1, (B, C, H, W), dtype=jnp.float32)
    dmap = jax.random.uniform(k2, (B, H, W), dtype=jnp.float32, minval=0.0, maxval=255.0)
    dmap = jnp.where(dmap < 64.0, 0.0, dmap)  # exact zeros so count_nonzero matters

    loss = jax.jit(distance_map_min_entropy)(pred, dmap)
    jax.block_until_ready(loss)
    ref = _reference(pred, dmap)
    assert jnp.allclose(loss, ref, rtol=1e-4, atol=1e-6), (loss, ref)

    # Test 2: multi-tile grid with a ragged (masked) last spatial block.
    B2, C2, H2, W2 = 1, 21, 18, 18            # HW = 324, tile 128 -> 3 blocks, ragged
    pred2 = jax.random.normal(k3, (B2, C2, H2, W2), dtype=jnp.float32)
    dmap2 = jax.random.uniform(k4, (B2, H2, W2), dtype=jnp.float32, minval=0.0, maxval=255.0)
    dmap2 = jnp.where(dmap2 < 64.0, 0.0, dmap2)

    loss2 = distance_map_min_entropy(pred2, dmap2, max_tile=128)
    jax.block_until_ready(loss2)
    ref2 = _reference(pred2, dmap2)
    assert jnp.allclose(loss2, ref2, rtol=1e-4, atol=1e-6), (loss2, ref2)

    print("KERNEL_OK")
</pallas_src>

<mosaic_0001>
module attributes {stable_mosaic.version = 11 : i64} {
  func.func @_partial_entropy_kernel(%arg0: i32, %arg1: i32, %arg2: memref<1x21x256xf32, #tpu.memory_space<vmem>>, %arg3: memref<1x1x256xf32, #tpu.memory_space<vmem>>, %arg4: memref<1x1x8x128xf32, #tpu.memory_space<vmem>>) attributes {dimension_semantics = [#tpu.dimension_semantics<parallel>, #tpu.dimension_semantics<parallel>], iteration_bounds = array<i64: 2, 1>, scalar_prefetch = 0 : i64, scratch_operands = 0 : i64, tpu.core_type = #tpu.core_type<tc>, window_params = [{transform_indices = @transform_0, window_bounds = array<i64: 1, 21, 256>}, {transform_indices = @transform_1, window_bounds = array<i64: 1, 1, 256>}, {transform_indices = @transform_2, window_bounds = array<i64: 1, 1, 8, 128>}]} {
    %c0 = arith.constant 0 : index
    %c0_0 = arith.constant 0 : index
    %c0_1 = arith.constant 0 : index
    %0 = vector.load %arg2[%c0, %c0_0, %c0_1] : memref<1x21x256xf32, #tpu.memory_space<vmem>>, vector<1x21x256xf32>
    %1 = vector.shape_cast %0 : vector<1x21x256xf32> to vector<21x256xf32>
    %cst = arith.constant dense<0xFF800000> : vector<256xf32>
    %2 = vector.multi_reduction <maximumf>, %1, %cst [0] : vector<21x256xf32> to vector<256xf32>
    %3 = vector.shape_cast %2 : vector<256xf32> to vector<1x256xf32>
    %4 = vector.broadcast %3 : vector<1x256xf32> to vector<21x256xf32>
    %5 = arith.subf %1, %4 : vector<21x256xf32>
    %6 = math.exp %5 : vector<21x256xf32>
    %cst_2 = arith.constant dense<0.000000e+00> : vector<256xf32>
    %7 = vector.multi_reduction <add>, %6, %cst_2 [0] : vector<21x256xf32> to vector<256xf32>
    %8 = vector.shape_cast %7 : vector<256xf32> to vector<1x256xf32>
    %9 = arith.mulf %6, %5 : vector<21x256xf32>
    %cst_3 = arith.constant dense<0.000000e+00> : vector<256xf32>
    %10 = vector.multi_reduction <add>, %9, %cst_3 [0] : vector<21x256xf32> to vector<256xf32>
    %11 = vector.shape_cast %10 : vector<256xf32> to vector<1x256xf32>
    %12 = arith.divf %11, %8 : vector<1x256xf32>
    %13 = math.log %8 : vector<1x256xf32>
    %14 = arith.subf %12, %13 : vector<1x256xf32>
    %c0_4 = arith.constant 0 : index
    %c0_5 = arith.constant 0 : index
    %c0_6 = arith.constant 0 : index
    %15 = vector.load %arg3[%c0_4, %c0_5, %c0_6] : memref<1x1x256xf32, #tpu.memory_space<vmem>>, vector<1x1x256xf32>
    %16 = vector.shape_cast %15 : vector<1x1x256xf32> to vector<1x256xf32>
    %17 = arith.mulf %16, %14 : vector<1x256xf32>
    %cst_7 = arith.constant dense<0.000000e+00> : vector<1xf32>
    %18 = vector.multi_reduction <add>, %17, %cst_7 [1] : vector<1x256xf32> to vector<1xf32>
    %19 = vector.shape_cast %18 : vector<1xf32> to vector<1x1xf32>
    %cst_8 = arith.constant 0.000000e+00 : f32
    %20 = vector.broadcast %cst_8 : f32 to vector<1x256xf32>
    %21 = arith.cmpf one, %17, %20 : vector<1x256xf32>
    %22 = arith.extui %21 : vector<1x256xi1> to vector<1x256xi32>
    %23 = arith.sitofp %22 : vector<1x256xi32> to vector<1x256xf32>
    %cst_9 = arith.constant dense<0.000000e+00> : vector<1xf32>
    %24 = vector.multi_reduction <add>, %23, %cst_9 [1] : vector<1x256xf32> to vector<1xf32>
    %25 = vector.shape_cast %24 : vector<1xf32> to vector<1x1xf32>
    %26 = tpu.iota {dimensions = array<i32: 0>} : vector<8x128xi32>
    %27 = tpu.iota {dimensions = array<i32: 1>} : vector<8x128xi32>
    %c0_i32 = arith.constant 0 : i32
    %28 = vector.broadcast %c0_i32 : i32 to vector<8x128xi32>
    %29 = arith.cmpi eq, %26, %28 : vector<8x128xi32>
    %c0_i32_10 = arith.constant 0 : i32
    %30 = vector.broadcast %c0_i32_10 : i32 to vector<8x128xi32>
    %31 = arith.cmpi eq, %27, %30 : vector<8x128xi32>
    %32 = arith.andi %29, %31 : vector<8x128xi1>
    %cst_11 = arith.constant 0.000000e+00 : f32
    %33 = vector.shape_cast %19 : vector<1x1xf32> to vector<1x1xf32>
    %34 = vector.broadcast %33 : vector<1x1xf32> to vector<8x128xf32>
    %35 = vector.broadcast %cst_11 : f32 to vector<8x128xf32>
    %36 = arith.select %32, %34, %35 : vector<8x128xi1>, vector<8x128xf32>
    %c1_i32 = arith.constant 1 : i32
    %37 = vector.broadcast %c1_i32 : i32 to vector<8x128xi32>
    %38 = arith.cmpi eq, %26, %37 : vector<8x128xi32>
    %c0_i32_12 = arith.constant 0 : i32
    %39 = vector.broadcast %c0_i32_12 : i32 to vector<8x128xi32>
    %40 = arith.cmpi eq, %27, %39 : vector<8x128xi32>
    %41 = arith.andi %38, %40 : vector<8x128xi1>
    %42 = vector.shape_cast %25 : vector<1x1xf32> to vector<1x1xf32>
    %43 = vector.broadcast %42 : vector<1x1xf32> to vector<8x128xf32>
    %44 = arith.select %41, %43, %36 : vector<8x128xi1>, vector<8x128xf32>
    %c0_13 = arith.constant 0 : index
    %c0_14 = arith.constant 0 : index
    %c0_15 = arith.constant 0 : index
    %c0_16 = arith.constant 0 : index
    %45 = vector.load %arg4[%c0_13, %c0_14, %c0_15, %c0_16] : memref<1x1x8x128xf32, #tpu.memory_space<vmem>>, vector<1x1x8x128xf32>
    %46 = vector.shape_cast %45 : vector<1x1x8x128xf32> to vector<8x128xf32>
    %47 = vector.shape_cast %44 : vector<8x128xf32> to vector<1x1x8x128xf32>
    tpu.vector_store %arg4[%c0_13, %c0_14, %c0_15, %c0_16], %47 {strides = array<i32>} : memref<1x1x8x128xf32, #tpu.memory_space<vmem>>, vector<1x1x8x128xf32>,
    return
  }
  func.func @transform_0(%arg0: i32, %arg1: i32) -> (i32, i32, i32) {
    %c0_i32 = arith.constant 0 : i32
    %c0_i32_0 = arith.constant 0 : i32
    return %arg0, %c0_i32, %arg1 : i32, i32, i32
  }
  func.func @transform_1(%arg0: i32, %arg1: i32) -> (i32, i32, i32) {
    %c0_i32 = arith.constant 0 : i32
    %c0_i32_0 = arith.constant 0 : i32
    return %arg0, %c0_i32, %arg1 : i32, i32, i32
  }
  func.func @transform_2(%arg0: i32, %arg1: i32) -> (i32, i32, i32, i32) {
    %c0_i32 = arith.constant 0 : i32
    %c0_i32_0 = arith.constant 0 : i32
    %c0_i32_1 = arith.constant 0 : i32
    return %arg0, %arg1, %c0_i32, %c0_i32_0 : i32, i32, i32, i32
  }
}

</mosaic_0001>

<llo_original>
// kernel: distance_map_min_entropy.1
$region0: #{distance_map_min_entropy.1}
  #allocation0 [shape = 'u32[]', space=smem, size = 0x4, offset = 0x4, fixed_abs, tag = 'smem constant byte address 0x4 - core index']
  #allocation1 [shape = 'u32[144,128]{1,0:T(1,128)}', space=vmem, size = 0x12000, scoped, tag = 'internal scratch']
  %s0 = inlined_call_operand.hbm [shape: f32[2,21,256], index: 0, kind: input, shape index: {}]
  %s1 = inlined_call_operand.hbm [shape: f32[2,1,256], index: 1, kind: input, shape index: {}]
  %s2 = inlined_call_operand.hbm [shape: f32[2,1,8,128], index: 2, kind: output, shape index: {}]
  %s3 = sld [smem:[#allocation0]]
  $region49: #{distance_map_min_entropy.1} parent=0
    _
  %s5 = ssub.s32 1, %s3
  %s6 = scalar_select 0, %s5, %s3
  $region1: #{distance_map_min_entropy.1} parent=0
    #allocation2 [shape = 'u8[49152]{0}', space=vmem, size = 0xc000, scoped, tag = 'input window, operand 0']
    #allocation3 [shape = 's32[2]{0}', space=sflag, size = 0x8, scoped, tag = 'scoped memory for distance_map_min_entropy.1']
    #allocation4 [shape = 's32[2]{0}', space=sflag, size = 0x8, scoped, tag = 'scoped memory for distance_map_min_entropy.1']
    #allocation5 [shape = 'u8[2048]{0}', space=vmem, size = 0x800, scoped, tag = 'input window, operand 1']
    #allocation6 [shape = 's32[2]{0}', space=sflag, size = 0x8, scoped, tag = 'scoped memory for distance_map_min_entropy.1']
    #allocation7 [shape = 'u8[8192]{0}', space=vmem, size = 0x2000, scoped, tag = 'output window, operand 0']
    %7 = vsyncpa [#allocation3], 0
    %s8 = scalar_lea.sflag [#allocation3], 1
    %9 = vsyncpa %s8, 0
    %10 = vsyncpa [#allocation6], 0
    %s11 = scalar_lea.sflag [#allocation6], 1
    %12 = vsyncpa %s11, 0
    %13 = vsyncpa [#allocation4], 0
    %s14 = scalar_lea.sflag [#allocation4], 1
    %15 = vsyncpa %s14, 0
    loop: start=0, step=1, limit=4
    $region2: #{distance_map_min_entropy.1} parent=1 // loop_pre_header
      _
    $region3: #{distance_map_min_entropy.1} parent=1 // loop_header
      %s17 = sphi 0, %s21
      %p18 = scmp.ge.s32.totalorder %s17, 4
      %s24 = sphi 0, %s36
      %s25 = sphi 0, %s32
      %s26 = sphi 0, %s24
      %s27 = sphi 0, %s25
      %s28 = sphi 0, %s26
      %s29 = sphi 0, %s27
      %s41 = sphi 0, %s43
      %s44 = sphi 0, %s41
      %s45 = sphi 0, %s44
      %s61 = sphi 0, %s45
      %s69 = sphi 0, %s71
      %s72 = sphi 0, %s69
      %s73 = sphi 0, %s72
      %s89 = sphi 0, %s73
      %s97 = sphi 0, %s99
      %s100 = sphi 0, %s97
      %s101 = sphi 0, %s100
      %s117 = sphi 0, %s101
    $region4: #{distance_map_min_entropy.1} parent=1 // loop_header_branch
      %20 = sbr.rel (%p18) target = $region8
    $region5: #{distance_map_min_entropy.1} parent=1 // loop_body
      %s22 = ssub.s32 %s17, 1
      %s23 = ssub.s32 %s17, 2
      %s30 = sadd.s32 1, %s25
      %p31 = scmp.ge.s32.totalorder %s30, 1
      %s32 = scalar_select %p31, 0, %s30
      %s33 = sadd.s32 1, %s24
      %s34 = scalar_select %p31, %s33, %s24
      %p35 = scmp.ge.s32.totalorder %s34, 2
      %s36 = scalar_select %p35, 0, %s34
      %s37 = ssub.s32 %s24, %s36
      %s38 = ssub.s32 %s25, %s32
      %s39 = sor.u32 %s37, %s38
      %p40 = scmp.eq.s32.totalorder %s39, 0
      %s42 = sadd.s32 %s41, 1
      %s43 = scalar_select %p40, %s41, %s42
      %p46 = pneg %p40
      %p47 = scmp.eq.s32.totalorder %s17, 1
      %p48 = por %p46, %p47
      %p49 = scmp.ne.s32.totalorder %s41, %s44
      %p50 = scmp.eq.s32.totalorder %s17, 0
      %p51 = por %p49, %p50
      %p52 = scmp.ne.s32.totalorder %s41, %s44
      %p53 = scmp.eq.s32.totalorder %s22, 1
      %p54 = por %p52, %p53
      %p55 = scmp.ne.s32.totalorder %s44, %s45
      %p56 = scmp.eq.s32.totalorder %s22, 0
      %p57 = por %p55, %p56
      %p58 = scmp.ne.s32.totalorder %s44, %s45
      %p59 = scmp.eq.s32.totalorder %s23, 1
      %p60 = por %p58, %p59
      %p62 = scmp.ne.s32.totalorder %s45, %s61
      %p63 = scmp.eq.s32.totalorder %s23, 0
      %p64 = por %p62, %p63
      %s65 = ssub.s32 %s24, %s36
      %s66 = ssub.s32 %s25, %s32
      %s67 = sor.u32 %s65, %s66
      %p68 = scmp.eq.s32.totalorder %s67, 0
      %s70 = sadd.s32 %s69, 1
      %s71 = scalar_select %p68, %s69, %s70
      %p74 = pneg %p68
      %p75 = scmp.eq.s32.totalorder %s17, 1
      %p76 = por %p74, %p75
      %p77 = scmp.ne.s32.totalorder %s69, %s72
      %p78 = scmp.eq.s32.totalorder %s17, 0
      %p79 = por %p77, %p78
      %p80 = scmp.ne.s32.totalorder %s69, %s72
      %p81 = scmp.eq.s32.totalorder %s22, 1
      %p82 = por %p80, %p81
      %p83 = scmp.ne.s32.totalorder %s72, %s73
      %p84 = scmp.eq.s32.totalorder %s22, 0
      %p85 = por %p83, %p84
      %p86 = scmp.ne.s32.totalorder %s72, %s73
      %p87 = scmp.eq.s32.totalorder %s23, 1
      %p88 = por %p86, %p87
      %p90 = scmp.ne.s32.totalorder %s73, %s89
      %p91 = scmp.eq.s32.totalorder %s23, 0
      %p92 = por %p90, %p91
      %s93 = ssub.s32 %s24, %s36
      %s94 = ssub.s32 %s25, %s32
      %s95 = sor.u32 %s93, %s94
      %p96 = scmp.eq.s32.totalorder %s95, 0
      %s98 = sadd.s32 %s97, 1
      %s99 = scalar_select %p96, %s97, %s98
      %p102 = pneg %p96
      %p103 = scmp.eq.s32.totalorder %s17, 1
      %p104 = por %p102, %p103
      %p105 = scmp.ne.s32.totalorder %s97, %s100
      %p106 = scmp.eq.s32.totalorder %s17, 0
      %p107 = por %p105, %p106
      %p108 = scmp.ne.s32.totalorder %s97, %s100
      %p109 = scmp.eq.s32.totalorder %s22, 1
      %p110 = por %p108, %p109
      %p111 = scmp.ne.s32.totalorder %s100, %s101
      %p112 = scmp.eq.s32.totalorder %s22, 0
      %p113 = por %p111, %p112
      %p114 = scmp.ne.s32.totalorder %s100, %s101
      %p115 = scmp.eq.s32.totalorder %s23, 1
      %p116 = por %p114, %p115
      %p118 = scmp.ne.s32.totalorder %s101, %s117
      %p119 = scmp.eq.s32.totalorder %s23, 0
      %p120 = por %p118, %p119
      %p121 = scmp.le.s32.totalorder 1, %s17
      %p122 = scmp.lt.s32.totalorder %s17, 3
      %p123 = pnand %p121, %p122
      %p124 = pneg %p123
      // Predicated region
      $region9: #{distance_map_min_entropy.1} parent=5 // pred_check
        _
      $region10: #{distance_map_min_entropy.1} parent=5 // pred_check_branch
        %126 = sbr.rel (%p123) target = $region12
      $region11: #{distance_map_min_entropy.1} parent=5 // pred_region
        %s127 = ssub.s32 %s17, 1
      $region12: #{distance_map_min_entropy.1} parent=5 // pred_fallthru
        _
      %p128 = scmp.lt.s32.totalorder %s17, 2
      // Predicated region
      $region13: #{distance_map_min_entropy.1} parent=5 // pred_check
        %p129 = pneg %p128
      $region14: #{distance_map_min_entropy.1} parent=5 // pred_check_branch
        %131 = sbr.rel (%p129) target = $region16
      $region15: #{distance_map_min_entropy.1} parent=5 // pred_region
        // Predicated region
        $region17: #{distance_map_min_entropy.1} parent=15 // pred_check
          %p132 = pneg %p51
        $region18: #{distance_map_min_entropy.1} parent=15 // pred_check_branch
          %134 = sbr.rel (%p132) target = $region20
        $region19: #{distance_map_min_entropy.1} parent=15 // pred_region
          %s135 = sand.u32 %s41, 1
          %s136 = scalar_lea.sflag [#allocation3], %s135
          %s137 = sand.u32 %s41, 1
          %s138 = smul.addr %s137, 48
          %s139 = scalar_lea.vmem [#allocation2], %s138
          %s140 = smul.u32 2, %s25
          %s142 = ssub.s32 768, 768
          %143 = vsyncadd %s136, %s142
          %s144 = smul.addr %s24, 6
          %s145 = sadd.s32 %s140, %s144
          %s146 = smul.addr %s145, 128
          %s147 = scalar_lea.hbm %s0, %s146
          %s148 = sshll.u32 %s139, 4
          %s149 = int_to_ptr.vmem [resolvable:$true] %s148
          %154 = dma.hbm_to_vmem [thread:$0]  %s147, 768, %s149, %s136, 256, 256, 16
        $region20: #{distance_map_min_entropy.1} parent=15 // pred_fallthru
          _
        // Predicated region
        $region21: #{distance_map_min_entropy.1} parent=15 // pred_check
          %p155 = pneg %p79
        $region22: #{distance_map_min_entropy.1} parent=15 // pred_check_branch
          %157 = sbr.rel (%p155) target = $region24
        $region23: #{distance_map_min_entropy.1} parent=15 // pred_region
          %s158 = sand.u32 %s69, 1
          %s159 = scalar_lea.sflag [#allocation6], %s158
          %s160 = sand.u32 %s69, 1
          %s161 = smul.addr %s160, 2
          %s162 = scalar_lea.vmem [#allocation5], %s161
          %s163 = smul.u32 2, %s25
          %s165 = ssub.s32 32, 32
          %166 = vsyncadd %s159, %s165
          %s167 = smul.addr %s24, 2
          %s168 = sadd.s32 %s163, %s167
          %s169 = smul.addr %s168, 16
          %s170 = scalar_lea.hbm %s1, %s169
          %s172 = sshll.u32 %s162, 4
          %s173 = int_to_ptr.vmem [resolvable:$true] %s172
          %175 = dma.hbm_to_vmem [thread:$0]  %s170, 32, %s173, %s159
        $region24: #{distance_map_min_entropy.1} parent=15 // pred_fallthru
          _
      $region16: #{distance_map_min_entropy.1} parent=5 // pred_fallthru
        _
      %p176 = scmp.le.s32.totalorder 1, %s17
      %p177 = scmp.lt.s32.totalorder %s17, 3
      %p178 = pnand %p176, %p177
      %p179 = pneg %p178
      // Predicated region
      $region25: #{distance_map_min_entropy.1} parent=5 // pred_check
        _
      $region26: #{distance_map_min_entropy.1} parent=5 // pred_check_branch
        %181 = sbr.rel (%p178) target = $region28
      $region27: #{distance_map_min_entropy.1} parent=5 // pred_region
        %s182 = ssub.s32 %s17, 1
        %s183 = sand.u32 %s44, 1
        %s184 = scalar_lea.sflag [#allocation3], %s183
        %s185 = sand.u32 %s44, 1
        %s186 = smul.addr %s185, 48
        %s187 = scalar_lea.vmem [#allocation2], %s186
        // Predicated region
        $region29: #{distance_map_min_entropy.1} parent=27 // pred_check
          %p188 = pneg %p57
        $region30: #{distance_map_min_entropy.1} parent=27 // pred_check_branch
          %190 = sbr.rel (%p188) target = $region32
        $region31: #{distance_map_min_entropy.1} parent=27 // pred_region
          %191 = dma.done %s184, 768
        $region32: #{distance_map_min_entropy.1} parent=27 // pred_fallthru
          _
        %s192 = sand.u32 %s72, 1
        %s193 = scalar_lea.sflag [#allocation6], %s192
        %s194 = sand.u32 %s72, 1
        %s195 = smul.addr %s194, 2
        %s196 = scalar_lea.vmem [#allocation5], %s195
        // Predicated region
        $region33: #{distance_map_min_entropy.1} parent=27 // pred_check
          %p197 = pneg %p85
        $region34: #{distance_map_min_entropy.1} parent=27 // pred_check_branch
          %199 = sbr.rel (%p197) target = $region36
        $region35: #{distance_map_min_entropy.1} parent=27 // pred_region
          %200 = dma.done %s193, 32
        $region36: #{distance_map_min_entropy.1} parent=27 // pred_fallthru
          _
        %s201 = sand.u32 %s44, 1
        %s202 = scalar_lea.sflag [#allocation3], %s201
        %s203 = sand.u32 %s44, 1
        %s204 = smul.addr %s203, 48
        %s205 = scalar_lea.vmem [#allocation2], %s204
        %p206 = pneg %p57
        %p207 = pneg %p54
        %s208 = sand.u32 %s72, 1
        %s209 = scalar_lea.sflag [#allocation6], %s208
        %s210 = sand.u32 %s72, 1
        %s211 = smul.addr %s210, 2
        %s212 = scalar_lea.vmem [#allocation5], %s211
        %p213 = pneg %p85
        %p214 = pneg %p82
        %p215 = pneg %p113
        %p216 = pneg %p110
        %s217 = sand.u32 %s100, 1
        %s218 = scalar_lea.sflag [#allocation4], %s217
        %s219 = sand.u32 %s100, 1
        %s220 = smul.addr %s219, 8
        %s221 = scalar_lea.vmem [#allocation7], %s220
        %s222 = smul.u32 2, %s27
        %s223 = smul.u32 2, %s27
        %v224 = vld [vmem:[%s187] sm:$0xff]
        %v225 = vld [vmem:[%s187 + $0x8] sm:$0xff]
        %v226 = vld [vmem:[%s187 + $0x10] sm:$0xff]
        %v227 = vld [vmem:[%s187 + $0x18] sm:$0xff]
        %v228 = vld [vmem:[%s187 + $0x20] sm:$0x1f]
        %v229 = vld [vmem:[%s187 + $0x28] sm:$0x1f]
        %vm230 = vcmask 1044480
        %v231 = vsel %vm230, %v228, -inf
        %v232 = vmax.f32 %v224, %v231
        %v233 = vmax.f32 %v232, %v226
        %v234 = vrot.slane %v233, 4
        %v235 = vmax.f32 %v233, %v234
        %v236 = vrot.slane %v235, 2
        %v237 = vmax.f32 %v235, %v236
        %v238 = vrot.slane %v237, 1
        %v239 = vmax.f32 %v237, %v238
        %v240 = vsel %vm230, %v229, -inf
        %v241 = vmax.f32 %v225, %v240
        %v242 = vmax.f32 %v241, %v227
        %v243 = vrot.slane %v242, 4
        %v244 = vmax.f32 %v242, %v243
        %v245 = vrot.slane %v244, 2
        %v246 = vmax.f32 %v244, %v245
        %v247 = vrot.slane %v246, 1
        %v248 = vmax.f32 %v246, %v247
        %v249 = vsub.f32 %v224, %v239
        %v250 = vsub.f32 %v225, %v248
        %v251 = vsub.f32 %v226, %v239
        %v252 = vsub.f32 %v227, %v248
        %v253 = vsub.f32 %v228, %v239
        %v254 = vsub.f32 %v229, %v248
        %v255 = vmul.f32 %v249, 1.442695
        %v256 = vpow.pop %v255
        %v257 = vmul.f32 %v250, 1.442695
        %v258 = vpow.pop %v257
        %v259 = vmul.f32 %v251, 1.442695
        %v260 = vpow.pop %v259
        %v261 = vmul.f32 %v252, 1.442695
        %v262 = vpow.pop %v261
        %v263 = vmul.f32 %v253, 1.442695
        %v264 = vpow.pop %v263
        %v265 = vmul.f32 %v254, 1.442695
        %v266 = vpow.pop %v265
        %v267 = vadd.f32 %v256, %v260
        %v268 = vsel %vm230, %v264, 0.0
        %v269 = vadd.f32 %v267, %v268
        %v270 = vrot.slane %v269, 4
        %v271 = vadd.f32 %v269, %v270
        %v272 = vrot.slane %v271, 2
        %v273 = vadd.f32 %v271, %v272
        %v274 = vrot.slane %v273, 1
        %v275 = vadd.f32 %v273, %v274
        %v276 = vadd.f32 %v258, %v262
        %v277 = vsel %vm230, %v266, 0.0
        %v278 = vadd.f32 %v276, %v277
        %v279 = vrot.slane %v278, 4
        %v280 = vadd.f32 %v278, %v279
        %v281 = vrot.slane %v280, 2
        %v282 = vadd.f32 %v280, %v281
        %v283 = vrot.slane %v282, 1
        %v284 = vadd.f32 %v282, %v283
        %v285 = vmul.f32 %v256, %v249
        %v286 = vmul.f32 %v258, %v250
        %v287 = vmul.f32 %v260, %v251
        %v288 = vmul.f32 %v262, %v252
        %v289 = vmul.f32 %v264, %v253
        %v290 = vmul.f32 %v266, %v254
        %v291 = vadd.f32 %v285, %v287
        %v292 = vsel %vm230, %v289, 0.0
        %v293 = vadd.f32 %v291, %v292
        %v294 = vrot.slane %v293, 4
        %v295 = vadd.f32 %v293, %v294
        %v296 = vrot.slane %v295, 2
        %v297 = vadd.f32 %v295, %v296
        %v298 = vrot.slane %v297, 1
        %v299 = vadd.f32 %v297, %v298
        %v300 = vadd.f32 %v286, %v288
        %v301 = vsel %vm230, %v290, 0.0
        %v302 = vadd.f32 %v300, %v301
        %v303 = vrot.slane %v302, 4
        %v304 = vadd.f32 %v302, %v303
        %v305 = vrot.slane %v304, 2
        %v306 = vadd.f32 %v304, %v305
        %v307 = vrot.slane %v306, 1
        %v308 = vadd.f32 %v306, %v307
        %v309 = vrcp.pop %v275
        %v310 = vmul.f32 %v299, %v309
        %v311 = vrcp.pop %v284
        %v312 = vmul.f32 %v308, %v311
        %v313 = vlog2.pop %v275
        %v314 = vmul.f32 %v313, 0.6931472
        %v315 = vlog2.pop %v284
        %v316 = vmul.f32 %v315, 0.6931472
        %v317 = vsub.f32 %v310, %v314
        %v318 = vsub.f32 %v312, %v316
        %v319 = vld [vmem:[%s196] sm:$0x3]
        %v322 = vcombine.low %v317, %v318
        %v324 = vunpack.c.l.s4 1966171168
        %v325 = vunpack.c.0.s8 %v324
        %v326 = vlaneseq
        %v327 = vshrl.u32 %v326, 7
        %v328 = vsub.s32 %v325, %v327
        %v329 = vrot.slane %v322, %v328
        %v331 = vunpack.c.l.s4 1966171168
        %v332 = vunpack.c.0.s8 %v331
        %v333 = vlaneseq
        %v334 = vshrl.u32 %v333, 7
        %v335 = vsub.s32 %v332, %v334
        %v336 = vrot.slane %v329, %v335
        %v338 = vmul.f32 %v319, %v336
        %v340 = vlaneseq
        %v341 = vshrl.u32 %v340, 7
        %v342 = vsub.s32 0, %v341
        %v343 = vrot.slane %v338, %v342
        %v344 = vlaneseq
        %v345 = vshrl.u32 %v344, 7
        %v346 = vsub.s32 1, %v345
        %v347 = vrot.slane %v338, %v346
        %vm350 = vcmask 1040384
        %v351 = vsel %vm350, %v343, 0.0
        %v352 = vsel %vm350, %v347, 0.0
        %v353 = vadd.f32 %v351, %v352
        %354 = vadd.xlane.f32.xlu0 %v353
        %v355 = vpop.xlane.xlu0 %354
        %vm356 = vcmp.ne.f32.partialorder %v338, 0.0
        %v357 = vsel %vm356, 1, 0
        %v358 = vcvt.s32.f32 %v357
        %v360 = vlaneseq
        %v361 = vshrl.u32 %v360, 7
        %v362 = vsub.s32 0, %v361
        %v363 = vrot.slane %v358, %v362
        %v364 = vlaneseq
        %v365 = vshrl.u32 %v364, 7
        %v366 = vsub.s32 1, %v365
        %v367 = vrot.slane %v358, %v366
        %v370 = vsel %vm350, %v363, 0.0
        %v371 = vsel %vm350, %v367, 0.0
        %v372 = vadd.f32 %v370, %v371
        %373 = vadd.xlane.f32.xlu0 %v372
        %v374 = vpop.xlane.xlu0 %373
        %v375 = vlaneseq
        %v376 = vshrl.u32 %v375, 7
        %v377 = vlaneseq
        %v378 = vand.u32 %v377, 127
        %vm379 = vcmp.eq.s32.totalorder %v376, 0
        %vm380 = vcmp.eq.s32.totalorder %v378, 0
        %vm381 = vmand %vm379, %vm380
        %v382 = vlaneseq
        %v383 = vshrl.u32 %v382, 7
        %v384 = vsub.s32 0, %v383
        %v385 = vrot.slane %v355, %v384
        %v386 = vsel %vm381, %v385, 0.0
        %vm387 = vcmp.eq.s32.totalorder %v376, 1
        %vm388 = vmand %vm387, %vm380
        %v389 = vlaneseq
        %v390 = vshrl.u32 %v389, 7
        %v391 = vsub.s32 0, %v390
        %v392 = vrot.slane %v374, %v391
        %v393 = vsel %vm388, %v392, %v386
        %394 = vst [vmem:[%s221] sm:$0xff] %v393
        %s395 = sand.u32 %s100, 1
        %s396 = scalar_lea.sflag [#allocation4], %s395
        %s397 = sand.u32 %s100, 1
        %s398 = smul.addr %s397, 8
        %s399 = scalar_lea.vmem [#allocation7], %s398
        // Predicated region
        $region37: #{distance_map_min_entropy.1} parent=27 // pred_check
          %p400 = pneg %p110
        $region38: #{distance_map_min_entropy.1} parent=27 // pred_check_branch
          %402 = sbr.rel (%p400) target = $region40
        $region39: #{distance_map_min_entropy.1} parent=27 // pred_region
          %s404 = ssub.s32 128, 128
          %405 = vsyncadd %s396, %s404
          %s406 = sadd.s32 %s27, %s26
          %s407 = smul.addr %s406, 128
          %s408 = scalar_lea.hbm %s2, %s407
          %s410 = sshll.u32 %s399, 4
          %s411 = int_to_ptr.vmem [resolvable:$true] %s410
          %413 = dma.vmem_to_hbm [thread:$0]  %s411, 128, %s408, %s396
        $region40: #{distance_map_min_entropy.1} parent=27 // pred_fallthru
          _
      $region28: #{distance_map_min_entropy.1} parent=5 // pred_fallthru
        _
      %p414 = scmp.le.s32.totalorder 2, %s17
      // Predicated region
      $region41: #{distance_map_min_entropy.1} parent=5 // pred_check
        %p415 = pneg %p414
      $region42: #{distance_map_min_entropy.1} parent=5 // pred_check_branch
        %417 = sbr.rel (%p415) target = $region44
      $region43: #{distance_map_min_entropy.1} parent=5 // pred_region
        %s418 = ssub.s32 %s17, 2
        // Predicated region
        $region45: #{distance_map_min_entropy.1} parent=43 // pred_check
          %p419 = pneg %p116
        $region46: #{distance_map_min_entropy.1} parent=43 // pred_check_branch
          %421 = sbr.rel (%p419) target = $region48
        $region47: #{distance_map_min_entropy.1} parent=43 // pred_region
          %s422 = sand.u32 %s101, 1
          %s423 = scalar_lea.sflag [#allocation4], %s422
          %s424 = sand.u32 %s101, 1
          %s425 = smul.addr %s424, 8
          %s426 = scalar_lea.vmem [#allocation7], %s425
          %427 = dma.done %s423, 128
        $region48: #{distance_map_min_entropy.1} parent=43 // pred_fallthru
          _
      $region44: #{distance_map_min_entropy.1} parent=5 // pred_fallthru
        _
    $region6: #{distance_map_min_entropy.1} parent=1 // loop_footer
      %s21 = sadd.s32 1, %s17
    $region7: #{distance_map_min_entropy.1} parent=1 // loop_footer_branch
      %16 = sbr.rel target = $region3
    $region8: #{distance_map_min_entropy.1} parent=1 // loop_exit
      _
    %428 = vsyncpa [#allocation3], 1
    %s429 = scalar_lea.sflag [#allocation3], 1
    %430 = vsyncpa %s429, 1
    %431 = vsyncpa [#allocation6], 1
    %s432 = scalar_lea.sflag [#allocation6], 1
    %433 = vsyncpa %s432, 1
    %434 = vsyncpa [#allocation4], 1
    %s435 = scalar_lea.sflag [#allocation4], 1
    %436 = vsyncpa %s435, 1

</llo_original>
